<compile_context>
chip_gen: v6e
topology: v6e:2x2x1
jax: 0.10.0
libtpu: 0.0.40
codegen_flags: <defaults>
</compile_context>

<pallas_src>
import jax
import jax.numpy as jnp
from jax.experimental import pallas as pl
from jax.experimental.pallas import tpu as pltpu


LANE = 128


def _round_up(v, m=LANE):
    return ((v + m - 1) // m) * m


# ----------------------------------------------------------------------------
# Pallas kernel: fused 2-layer GCN forward for ONE graph per grid step.
#   h1 = relu(A @ (X @ W1) + b1)
#   y  =       A @ (h1 @ W2) + b2
# A / X / W are bf16 (MXU bf16 rate), accumulation + bias + ReLU in f32,
# all dims padded to 128 so loads/stores are lane-dense.
# ----------------------------------------------------------------------------
def _gcn_tower_kernel(a_ref, x_ref, w1_ref, b1_ref, w2_ref, b2_ref, out_ref):
    a = a_ref[0]                          # [NP, NP]  bf16
    x = x_ref[0]                          # [NP, DP]  bf16

    # ---- layer 1: GCNConv(input -> hidden) + ReLU ----
    xw1 = jnp.dot(x, w1_ref[...], preferred_element_type=jnp.float32)        # [NP, HP] f32
    h1 = jnp.dot(a, xw1.astype(jnp.bfloat16),
                 preferred_element_type=jnp.float32) + b1_ref[...]
    h1 = jnp.maximum(h1, 0.0)

    # ---- layer 2: GCNConv(hidden -> out) ----
    hw2 = jnp.dot(h1.astype(jnp.bfloat16), w2_ref[...],
                  preferred_element_type=jnp.float32)                         # [NP, OP] f32
    y = jnp.dot(a, hw2.astype(jnp.bfloat16),
                preferred_element_type=jnp.float32) + b2_ref[...]

    out_ref[0] = y                        # f32, lane-dense store (OP % 128 == 0)


def gnn_item_tower_batched(x, a_hat, w1, b1, w2, b2):
    """Batched item tower.

    x:     [B, N, Din] f32
    a_hat: [B, N, N]   f32 (normalized dense adjacency per graph)
    w1: [Din, H], b1: [1, H], w2: [H, O], b2: [1, O]  (shared parameters)
    returns [B, N, O] f32
    """
    B, N, Din = x.shape
    H = w1.shape[1]
    O = w2.shape[1]
    NP, DP, HP, OP = _round_up(N), _round_up(Din), _round_up(H), _round_up(O)

    def pad2(arr, rows, cols, dtype):
        buf = jnp.zeros((rows, cols), dtype)
        return buf.at[: arr.shape[0], : arr.shape[1]].set(arr.astype(dtype))

    # Zero-padding is exact: padded A columns are zero, so padded rows of
    # X@W / h1 never contribute to real rows, and padded output rows/cols
    # are sliced off below.
    a_p = jnp.zeros((B, NP, NP), jnp.bfloat16).at[:, :N, :N].set(
        a_hat.astype(jnp.bfloat16))
    x_p = jnp.zeros((B, NP, DP), jnp.bfloat16).at[:, :N, :Din].set(
        x.astype(jnp.bfloat16))
    w1_p = pad2(w1, DP, HP, jnp.bfloat16)
    w2_p = pad2(w2, HP, OP, jnp.bfloat16)
    b1_p = pad2(b1, 1, HP, jnp.float32)
    b2_p = pad2(b2, 1, OP, jnp.float32)

    out = pl.pallas_call(
        _gcn_tower_kernel,
        out_shape=jax.ShapeDtypeStruct((B, NP, OP), jnp.float32),
        grid=(B,),
        in_specs=[
            pl.BlockSpec((1, NP, NP), lambda b: (b, 0, 0)),   # A_hat[b]
            pl.BlockSpec((1, NP, DP), lambda b: (b, 0, 0)),   # X[b]
            pl.BlockSpec((DP, HP), lambda b: (0, 0)),         # W1 (shared, no re-DMA)
            pl.BlockSpec((1, HP), lambda b: (0, 0)),          # b1
            pl.BlockSpec((HP, OP), lambda b: (0, 0)),         # W2
            pl.BlockSpec((1, OP), lambda b: (0, 0)),          # b2
        ],
        out_specs=pl.BlockSpec((1, NP, OP), lambda b: (b, 0, 0)),
        compiler_params=pltpu.CompilerParams(
            dimension_semantics=("parallel",)),               # shard graphs across TCs
    )(a_p, x_p, w1_p, b1_p, w2_p, b2_p)
    return out[:, :N, :O]


def gnn_item_tower(x, a_hat, w1, b1, w2, b2):
    """Single-graph forward matching GNNItemTower.forward(x, edge_index)."""
    return gnn_item_tower_batched(x[None], a_hat[None], w1, b1, w2, b2)[0]


# ----------------------------------------------------------------------------
# Glue (plain JAX): symmetrically-normalized dense adjacency, matching
# torch_geometric's gcn_norm with add_self_loops=True.
# ----------------------------------------------------------------------------
def build_normalized_adjacency(edge_index, num_nodes):
    src = edge_index[0]
    dst = edge_index[1]
    loop = jnp.arange(num_nodes, dtype=edge_index.dtype)
    src = jnp.concatenate([src, loop])
    dst = jnp.concatenate([dst, loop])
    a = jnp.zeros((num_nodes, num_nodes), jnp.float32).at[dst, src].add(1.0)
    deg = a.sum(axis=1)
    dinv = jnp.where(deg > 0.0, 1.0 / jnp.sqrt(deg), 0.0)
    return dinv[:, None] * a * dinv[None, :]


def make_synthetic_edge_index(num_nodes, key):
    """Deterministic symmetric edge list (stand-in for build_edges)."""
    k1, k2 = jax.random.split(key)
    n_pairs = 2 * num_nodes
    a = jax.random.randint(k1, (n_pairs,), 0, num_nodes, dtype=jnp.int32)
    b = jax.random.randint(k2, (n_pairs,), 0, num_nodes, dtype=jnp.int32)
    src = jnp.concatenate([a, b])
    dst = jnp.concatenate([b, a])
    return jnp.stack([src, dst], axis=0)  # [2, E], symmetric


def glorot(key, shape):
    fan_in, fan_out = shape
    limit = jnp.sqrt(6.0 / (fan_in + fan_out))
    return jax.random.uniform(key, shape, jnp.float32, -limit, limit)


if __name__ == "__main__":
    # Small shapes consistent with the module: hidden_dim=128 / out_dim=64 are
    # the module defaults; a small batch of independent graphs amortizes the
    # per-call overhead across one "parallel" grid axis.
    B = 4
    N = 16
    INPUT_DIM = 32
    HIDDEN_DIM = 128
    OUT_DIM = 64

    key = jax.random.PRNGKey(0)
    kx, ke, kw1, kw2 = jax.random.split(key, 4)

    x = jax.random.normal(kx, (B, N, INPUT_DIM), jnp.float32)
    edge_keys = jax.random.split(ke, B)
    a_hat = jnp.stack([
        build_normalized_adjacency(make_synthetic_edge_index(N, edge_keys[g]), N)
        for g in range(B)
    ])

    # GCNConv parameters (glorot weights, zero biases), deterministic init.
    w1 = glorot(kw1, (INPUT_DIM, HIDDEN_DIM))
    b1 = jnp.zeros((1, HIDDEN_DIM), jnp.float32)
    w2 = glorot(kw2, (HIDDEN_DIM, OUT_DIM))
    b2 = jnp.zeros((1, OUT_DIM), jnp.float32)

    out = gnn_item_tower_batched(x, a_hat, w1, b1, w2, b2)
    out = jax.block_until_ready(out)
    assert out.shape == (B, N, OUT_DIM)

    # Reference (same math, mirroring the kernel's bf16 operand rounding with
    # f32 accumulation).
    def reference(xg, ag):
        bf = lambda t: t.astype(jnp.bfloat16).astype(jnp.float32)
        xw1 = bf(xg) @ bf(w1)
        h1 = jnp.maximum(bf(ag) @ bf(xw1) + b1, 0.0)
        hw2 = bf(h1) @ bf(w2)
        return bf(ag) @ bf(hw2) + b2

    for g in range(B):
        ref = reference(x[g], a_hat[g])
        assert jnp.allclose(out[g], ref, atol=1e-2, rtol=1e-2), (
            float(jnp.max(jnp.abs(out[g] - ref))))

    print("KERNEL_OK")
</pallas_src>

<mosaic_0001>
module attributes {stable_mosaic.version = 11 : i64} {
  func.func @_gcn_tower_kernel(%arg0: i32, %arg1: memref<1x128x128xbf16, #tpu.memory_space<vmem>>, %arg2: memref<1x128x128xbf16, #tpu.memory_space<vmem>>, %arg3: memref<128x128xbf16, #tpu.memory_space<vmem>>, %arg4: memref<1x128xf32, #tpu.memory_space<vmem>>, %arg5: memref<128x128xbf16, #tpu.memory_space<vmem>>, %arg6: memref<1x128xf32, #tpu.memory_space<vmem>>, %arg7: memref<1x128x128xf32, #tpu.memory_space<vmem>>) attributes {dimension_semantics = [#tpu.dimension_semantics<parallel>], iteration_bounds = array<i64: 4>, scalar_prefetch = 0 : i64, scratch_operands = 0 : i64, tpu.core_type = #tpu.core_type<tc>, window_params = [{transform_indices = @transform_0, window_bounds = array<i64: 1, 128, 128>}, {transform_indices = @transform_1, window_bounds = array<i64: 1, 128, 128>}, {pipeline_mode = #tpu.pipeline_mode<synchronous>, transform_indices = @transform_2, window_bounds = array<i64: 128, 128>}, {pipeline_mode = #tpu.pipeline_mode<synchronous>, transform_indices = @transform_3, window_bounds = array<i64: 1, 128>}, {pipeline_mode = #tpu.pipeline_mode<synchronous>, transform_indices = @transform_4, window_bounds = array<i64: 128, 128>}, {pipeline_mode = #tpu.pipeline_mode<synchronous>, transform_indices = @transform_5, window_bounds = array<i64: 1, 128>}, {transform_indices = @transform_6, window_bounds = array<i64: 1, 128, 128>}]} {
    %c0 = arith.constant 0 : index
    %c0_0 = arith.constant 0 : index
    %c0_1 = arith.constant 0 : index
    %0 = vector.load %arg1[%c0, %c0_0, %c0_1] : memref<1x128x128xbf16, #tpu.memory_space<vmem>>, vector<1x128x128xbf16>
    %1 = vector.shape_cast %0 : vector<1x128x128xbf16> to vector<128x128xbf16>
    %c0_2 = arith.constant 0 : index
    %c0_3 = arith.constant 0 : index
    %c0_4 = arith.constant 0 : index
    %2 = vector.load %arg2[%c0_2, %c0_3, %c0_4] : memref<1x128x128xbf16, #tpu.memory_space<vmem>>, vector<1x128x128xbf16>
    %3 = vector.shape_cast %2 : vector<1x128x128xbf16> to vector<128x128xbf16>
    %c0_5 = arith.constant 0 : index
    %c0_6 = arith.constant 0 : index
    %4 = vector.load %arg3[%c0_5, %c0_6] : memref<128x128xbf16, #tpu.memory_space<vmem>>, vector<128x128xbf16>
    %cst = arith.constant dense<0.000000e+00> : vector<128x128xf32>
    %5 = tpu.matmul %3, %4, %cst {dimension_numbers = #tpu.dot_dimension_numbers<[1], [0], [0], [1], [0, 0, 1, 1], [], []>} : vector<128x128xbf16>, vector<128x128xbf16>, vector<128x128xf32> -> vector<128x128xf32>
    %6 = arith.truncf %5 : vector<128x128xf32> to vector<128x128xbf16>
    %cst_7 = arith.constant dense<0.000000e+00> : vector<128x128xf32>
    %7 = tpu.matmul %1, %6, %cst_7 {dimension_numbers = #tpu.dot_dimension_numbers<[1], [0], [0], [1], [0, 0, 1, 1], [], []>} : vector<128x128xbf16>, vector<128x128xbf16>, vector<128x128xf32> -> vector<128x128xf32>
    %c0_8 = arith.constant 0 : index
    %c0_9 = arith.constant 0 : index
    %8 = vector.load %arg4[%c0_8, %c0_9] : memref<1x128xf32, #tpu.memory_space<vmem>>, vector<1x128xf32>
    %9 = vector.broadcast %8 : vector<1x128xf32> to vector<128x128xf32>
    %10 = arith.addf %7, %9 : vector<128x128xf32>
    %cst_10 = arith.constant 0.000000e+00 : f32
    %11 = vector.broadcast %cst_10 : f32 to vector<128x128xf32>
    %12 = arith.maximumf %10, %11 : vector<128x128xf32>
    %13 = arith.truncf %12 : vector<128x128xf32> to vector<128x128xbf16>
    %c0_11 = arith.constant 0 : index
    %c0_12 = arith.constant 0 : index
    %14 = vector.load %arg5[%c0_11, %c0_12] : memref<128x128xbf16, #tpu.memory_space<vmem>>, vector<128x128xbf16>
    %cst_13 = arith.constant dense<0.000000e+00> : vector<128x128xf32>
    %15 = tpu.matmul %13, %14, %cst_13 {dimension_numbers = #tpu.dot_dimension_numbers<[1], [0], [0], [1], [0, 0, 1, 1], [], []>} : vector<128x128xbf16>, vector<128x128xbf16>, vector<128x128xf32> -> vector<128x128xf32>
    %16 = arith.truncf %15 : vector<128x128xf32> to vector<128x128xbf16>
    %cst_14 = arith.constant dense<0.000000e+00> : vector<128x128xf32>
    %17 = tpu.matmul %1, %16, %cst_14 {dimension_numbers = #tpu.dot_dimension_numbers<[1], [0], [0], [1], [0, 0, 1, 1], [], []>} : vector<128x128xbf16>, vector<128x128xbf16>, vector<128x128xf32> -> vector<128x128xf32>
    %c0_15 = arith.constant 0 : index
    %c0_16 = arith.constant 0 : index
    %18 = vector.load %arg6[%c0_15, %c0_16] : memref<1x128xf32, #tpu.memory_space<vmem>>, vector<1x128xf32>
    %19 = vector.broadcast %18 : vector<1x128xf32> to vector<128x128xf32>
    %20 = arith.addf %17, %19 : vector<128x128xf32>
    %c0_17 = arith.constant 0 : index
    %c0_18 = arith.constant 0 : index
    %c0_19 = arith.constant 0 : index
    %21 = vector.load %arg7[%c0_17, %c0_18, %c0_19] : memref<1x128x128xf32, #tpu.memory_space<vmem>>, vector<1x128x128xf32>
    %22 = vector.shape_cast %21 : vector<1x128x128xf32> to vector<128x128xf32>
    %23 = vector.shape_cast %20 : vector<128x128xf32> to vector<1x128x128xf32>
    tpu.vector_store %arg7[%c0_17, %c0_18, %c0_19], %23 {strides = array<i32>} : memref<1x128x128xf32, #tpu.memory_space<vmem>>, vector<1x128x128xf32>,
    return
  }
  func.func @transform_0(%arg0: i32) -> (i32, i32, i32) {
    %c0_i32 = arith.constant 0 : i32
    %c0_i32_0 = arith.constant 0 : i32
    %c0_i32_1 = arith.constant 0 : i32
    return %arg0, %c0_i32, %c0_i32_0 : i32, i32, i32
  }
  func.func @transform_1(%arg0: i32) -> (i32, i32, i32) {
    %c0_i32 = arith.constant 0 : i32
    %c0_i32_0 = arith.constant 0 : i32
    %c0_i32_1 = arith.constant 0 : i32
    return %arg0, %c0_i32, %c0_i32_0 : i32, i32, i32
  }
  func.func @transform_2(%arg0: i32) -> (i32, i32) {
    %c0_i32 = arith.constant 0 : i32
    %c0_i32_0 = arith.constant 0 : i32
    %c0_i32_1 = arith.constant 0 : i32
    return %c0_i32, %c0_i32_0 : i32, i32
  }
  func.func @transform_3(%arg0: i32) -> (i32, i32) {
    %c0_i32 = arith.constant 0 : i32
    %c0_i32_0 = arith.constant 0 : i32
    %c0_i32_1 = arith.constant 0 : i32
    return %c0_i32, %c0_i32_0 : i32, i32
  }
  func.func @transform_4(%arg0: i32) -> (i32, i32) {
    %c0_i32 = arith.constant 0 : i32
    %c0_i32_0 = arith.constant 0 : i32
    %c0_i32_1 = arith.constant 0 : i32
    return %c0_i32, %c0_i32_0 : i32, i32
  }
  func.func @transform_5(%arg0: i32) -> (i32, i32) {
    %c0_i32 = arith.constant 0 : i32
    %c0_i32_0 = arith.constant 0 : i32
    %c0_i32_1 = arith.constant 0 : i32
    return %c0_i32, %c0_i32_0 : i32, i32
  }
  func.func @transform_6(%arg0: i32) -> (i32, i32, i32) {
    %c0_i32 = arith.constant 0 : i32
    %c0_i32_0 = arith.constant 0 : i32
    %c0_i32_1 = arith.constant 0 : i32
    return %arg0, %c0_i32, %c0_i32_0 : i32, i32, i32
  }
}

</mosaic_0001>

<llo_original>
// kernel: tpu_custom_call.1
$region0: #{tpu_custom_call.1}
  #allocation0 [shape = 'u32[]', space=smem, size = 0x4, offset = 0x4, fixed_abs, tag = 'smem constant byte address 0x4 - core index']
  #allocation1 [shape = 'u32[144,128]{1,0:T(1,128)}', space=vmem, size = 0x12000, scoped, tag = 'internal scratch']
  %s0 = inlined_call_operand.hbm [shape: bf16[4,128,128], index: 0, kind: input, shape index: {}]
  %s1 = inlined_call_operand.hbm [shape: bf16[4,128,128], index: 1, kind: input, shape index: {}]
  %s2 = inlined_call_operand.hbm [shape: bf16[128,128], index: 2, kind: input, shape index: {}]
  %s3 = inlined_call_operand.vmem [shape: f32[1,128], index: 3, kind: input, shape index: {}]
  %s4 = inlined_call_operand.hbm [shape: bf16[128,128], index: 4, kind: input, shape index: {}]
  %s5 = inlined_call_operand.vmem [shape: f32[1,128], index: 5, kind: input, shape index: {}]
  %s6 = inlined_call_operand.hbm [shape: f32[4,128,128], index: 6, kind: output, shape index: {}]
  %s7 = sld [smem:[#allocation0]]
  $region73: #{tpu_custom_call.1} parent=0
    _
  %s9 = ssub.s32 1, %s7
  %s10 = scalar_select 0, %s9, %s7
  $region1: #{tpu_custom_call.1} parent=0
    #allocation2 [shape = 'u8[65536]{0}', space=vmem, size = 0x10000, scoped, tag = 'input window, operand 0']
    #allocation3 [shape = 's32[2]{0}', space=sflag, size = 0x8, scoped, tag = 'scoped memory for tpu_custom_call.1']
    #allocation4 [shape = 's32[2]{0}', space=sflag, size = 0x8, scoped, tag = 'scoped memory for tpu_custom_call.1']
    #allocation5 [shape = 'u8[65536]{0}', space=vmem, size = 0x10000, scoped, tag = 'input window, operand 1']
    #allocation6 [shape = 's32[2]{0}', space=sflag, size = 0x8, scoped, tag = 'scoped memory for tpu_custom_call.1']
    #allocation7 [shape = 'u8[32768]{0}', space=vmem, size = 0x8000, scoped, tag = 'input window, operand 2, single buffered']
    #allocation8 [shape = 'u8[32768]{0}', space=vmem, size = 0x8000, scoped, tag = 'input window, operand 4, single buffered']
    #allocation9 [shape = 's32[1]{0}', space=sflag, size = 0x4, scoped, tag = 'scoped memory for tpu_custom_call.1']
    #allocation10 [shape = 'u8[131072]{0}', space=vmem, size = 0x20000, scoped, tag = 'output window, operand 0']
    %11 = vsyncpa [#allocation3], 0
    %s12 = scalar_lea.sflag [#allocation3], 1
    %13 = vsyncpa %s12, 0
    %14 = vsyncpa [#allocation6], 0
    %s15 = scalar_lea.sflag [#allocation6], 1
    %16 = vsyncpa %s15, 0
    %17 = vsyncpa [#allocation9], 0
    %18 = vsyncpa [#allocation4], 0
    %s19 = scalar_lea.sflag [#allocation4], 1
    %20 = vsyncpa %s19, 0
    loop: start=0, step=1, limit=6
    $region2: #{tpu_custom_call.1} parent=1 // loop_pre_header
      _
    $region3: #{tpu_custom_call.1} parent=1 // loop_header
      %s22 = sphi 0, %s26
      %p23 = scmp.ge.s32.totalorder %s22, 6
      %s32 = sphi 0, %s34
      %s35 = sphi 0, %s32
      %s36 = sphi 0, %s35
      %s52 = sphi 0, %s36
      %s58 = sphi 0, %s60
      %s61 = sphi 0, %s58
      %s62 = sphi 0, %s61
      %s78 = sphi 0, %s62
      %s82 = sphi 0, %s82
      %s84 = sphi 0, %s82
      %s85 = sphi 0, %s84
      %s99 = sphi 0, %s85
      %s103 = sphi 0, %s103
      %s105 = sphi 0, %s103
      %s106 = sphi 0, %s105
      %s120 = sphi 0, %s106
      %s124 = sphi 0, %s124
      %s126 = sphi 0, %s124
      %s127 = sphi 0, %s126
      %s141 = sphi 0, %s127
      %s145 = sphi 0, %s145
      %s147 = sphi 0, %s145
      %s148 = sphi 0, %s147
      %s162 = sphi 0, %s148
      %s168 = sphi 0, %s170
      %s171 = sphi 0, %s168
      %s172 = sphi 0, %s171
      %s188 = sphi 0, %s172
    $region4: #{tpu_custom_call.1} parent=1 // loop_header_branch
      %25 = sbr.rel (%p23) target = $region8
    $region5: #{tpu_custom_call.1} parent=1 // loop_body
      %s27 = ssub.s32 %s22, 1
      %s28 = ssub.s32 %s22, 2
      %s29 = sadd.s32 %s22, 1
      %s30 = ssub.s32 %s22, %s29
      %p31 = scmp.eq.s32.totalorder %s30, 0
      %s33 = sadd.s32 %s32, 1
      %s34 = scalar_select %p31, %s32, %s33
      %p37 = pneg %p31
      %p38 = scmp.eq.s32.totalorder %s22, 3
      %p39 = por %p37, %p38
      %p40 = scmp.ne.s32.totalorder %s32, %s35
      %p41 = scmp.eq.s32.totalorder %s22, 0
      %p42 = por %p40, %p41
      %p43 = scmp.ne.s32.totalorder %s32, %s35
      %p44 = scmp.eq.s32.totalorder %s27, 3
      %p45 = por %p43, %p44
      %p46 = scmp.ne.s32.totalorder %s35, %s36
      %p47 = scmp.eq.s32.totalorder %s27, 0
      %p48 = por %p46, %p47
      %p49 = scmp.ne.s32.totalorder %s35, %s36
      %p50 = scmp.eq.s32.totalorder %s28, 3
      %p51 = por %p49, %p50
      %p53 = scmp.ne.s32.totalorder %s36, %s52
      %p54 = scmp.eq.s32.totalorder %s28, 0
      %p55 = por %p53, %p54
      %s56 = ssub.s32 %s22, %s29
      %p57 = scmp.eq.s32.totalorder %s56, 0
      %s59 = sadd.s32 %s58, 1
      %s60 = scalar_select %p57, %s58, %s59
      %p63 = pneg %p57
      %p64 = scmp.eq.s32.totalorder %s22, 3
      %p65 = por %p63, %p64
      %p66 = scmp.ne.s32.totalorder %s58, %s61
      %p67 = scmp.eq.s32.totalorder %s22, 0
      %p68 = por %p66, %p67
      %p69 = scmp.ne.s32.totalorder %s58, %s61
      %p70 = scmp.eq.s32.totalorder %s27, 3
      %p71 = por %p69, %p70
      %p72 = scmp.ne.s32.totalorder %s61, %s62
      %p73 = scmp.eq.s32.totalorder %s27, 0
      %p74 = por %p72, %p73
      %p75 = scmp.ne.s32.totalorder %s61, %s62
      %p76 = scmp.eq.s32.totalorder %s28, 3
      %p77 = por %p75, %p76
      %p79 = scmp.ne.s32.totalorder %s62, %s78
      %p80 = scmp.eq.s32.totalorder %s28, 0
      %p81 = por %p79, %p80
      %s83 = sadd.s32 %s82, 1
      %p86 = scmp.eq.s32.totalorder %s22, 3
      %p87 = scmp.ne.s32.totalorder %s82, %s84
      %p88 = scmp.eq.s32.totalorder %s22, 0
      %p89 = por %p87, %p88
      %p90 = scmp.ne.s32.totalorder %s82, %s84
      %p91 = scmp.eq.s32.totalorder %s27, 3
      %p92 = por %p90, %p91
      %p93 = scmp.ne.s32.totalorder %s84, %s85
      %p94 = scmp.eq.s32.totalorder %s27, 0
      %p95 = por %p93, %p94
      %p96 = scmp.ne.s32.totalorder %s84, %s85
      %p97 = scmp.eq.s32.totalorder %s28, 3
      %p98 = por %p96, %p97
      %p100 = scmp.ne.s32.totalorder %s85, %s99
      %p101 = scmp.eq.s32.totalorder %s28, 0
      %p102 = por %p100, %p101
      %s104 = sadd.s32 %s103, 1
      %p107 = scmp.eq.s32.totalorder %s22, 3
      %p108 = scmp.ne.s32.totalorder %s103, %s105
      %p109 = scmp.eq.s32.totalorder %s22, 0
      %p110 = por %p108, %p109
      %p111 = scmp.ne.s32.totalorder %s103, %s105
      %p112 = scmp.eq.s32.totalorder %s27, 3
      %p113 = por %p111, %p112
      %p114 = scmp.ne.s32.totalorder %s105, %s106
      %p115 = scmp.eq.s32.totalorder %s27, 0
      %p116 = por %p114, %p115
      %p117 = scmp.ne.s32.totalorder %s105, %s106
      %p118 = scmp.eq.s32.totalorder %s28, 3
      %p119 = por %p117, %p118
      %p121 = scmp.ne.s32.totalorder %s106, %s120
      %p122 = scmp.eq.s32.totalorder %s28, 0
      %p123 = por %p121, %p122
      %s125 = sadd.s32 %s124, 1
      %p128 = scmp.eq.s32.totalorder %s22, 3
      %p129 = scmp.ne.s32.totalorder %s124, %s126
      %p130 = scmp.eq.s32.totalorder %s22, 0
      %p131 = por %p129, %p130
      %p132 = scmp.ne.s32.totalorder %s124, %s126
      %p133 = scmp.eq.s32.totalorder %s27, 3
      %p134 = por %p132, %p133
      %p135 = scmp.ne.s32.totalorder %s126, %s127
      %p136 = scmp.eq.s32.totalorder %s27, 0
      %p137 = por %p135, %p136
      %p138 = scmp.ne.s32.totalorder %s126, %s127
      %p139 = scmp.eq.s32.totalorder %s28, 3
      %p140 = por %p138, %p139
      %p142 = scmp.ne.s32.totalorder %s127, %s141
      %p143 = scmp.eq.s32.totalorder %s28, 0
      %p144 = por %p142, %p143
      %s146 = sadd.s32 %s145, 1
      %p149 = scmp.eq.s32.totalorder %s22, 3
      %p150 = scmp.ne.s32.totalorder %s145, %s147
      %p151 = scmp.eq.s32.totalorder %s22, 0
      %p152 = por %p150, %p151
      %p153 = scmp.ne.s32.totalorder %s145, %s147
      %p154 = scmp.eq.s32.totalorder %s27, 3
      %p155 = por %p153, %p154
      %p156 = scmp.ne.s32.totalorder %s147, %s148
      %p157 = scmp.eq.s32.totalorder %s27, 0
      %p158 = por %p156, %p157
      %p159 = scmp.ne.s32.totalorder %s147, %s148
      %p160 = scmp.eq.s32.totalorder %s28, 3
      %p161 = por %p159, %p160
      %p163 = scmp.ne.s32.totalorder %s148, %s162
      %p164 = scmp.eq.s32.totalorder %s28, 0
      %p165 = por %p163, %p164
      %s166 = ssub.s32 %s22, %s29
      %p167 = scmp.eq.s32.totalorder %s166, 0
      %s169 = sadd.s32 %s168, 1
      %s170 = scalar_select %p167, %s168, %s169
      %p173 = pneg %p167
      %p174 = scmp.eq.s32.totalorder %s22, 3
      %p175 = por %p173, %p174
      %p176 = scmp.ne.s32.totalorder %s168, %s171
      %p177 = scmp.eq.s32.totalorder %s22, 0
      %p178 = por %p176, %p177
      %p179 = scmp.ne.s32.totalorder %s168, %s171
      %p180 = scmp.eq.s32.totalorder %s27, 3
      %p181 = por %p179, %p180
      %p182 = scmp.ne.s32.totalorder %s171, %s172
      %p183 = scmp.eq.s32.totalorder %s27, 0
      %p184 = por %p182, %p183
      %p185 = scmp.ne.s32.totalorder %s171, %s172
      %p186 = scmp.eq.s32.totalorder %s28, 3
      %p187 = por %p185, %p186
      %p189 = scmp.ne.s32.totalorder %s172, %s188
      %p190 = scmp.eq.s32.totalorder %s28, 0
      %p191 = por %p189, %p190
      %p192 = scmp.le.s32.totalorder 1, %s22
      %p193 = scmp.lt.s32.totalorder %s22, 5
      %p194 = pnand %p192, %p193
      %p195 = pneg %p194
      // Predicated region
      $region9: #{tpu_custom_call.1} parent=5 // pred_check
        _
      $region10: #{tpu_custom_call.1} parent=5 // pred_check_branch
        %197 = sbr.rel (%p194) target = $region12
      $region11: #{tpu_custom_call.1} parent=5 // pred_region
        %s198 = ssub.s32 %s22, 1
        // Predicated region
        $region13: #{tpu_custom_call.1} parent=11 // pred_check
          %p199 = pneg %p95
        $region14: #{tpu_custom_call.1} parent=11 // pred_check_branch
          %201 = sbr.rel (%p199) target = $region16
        $region15: #{tpu_custom_call.1} parent=11 // pred_region
          %s203 = ssub.s32 1024, 1024
          %204 = vsyncadd [#allocation6], %s203
          %s205 = sshll.u32 [#allocation7], 4
          %s206 = int_to_ptr.vmem [resolvable:$true] %s205
          %211 = dma.hbm_to_vmem [thread:$0]  %s2, 1024, %s206, [#allocation6], 64, 64, 4
        $region16: #{tpu_custom_call.1} parent=11 // pred_fallthru
          _
        // Predicated region
        $region17: #{tpu_custom_call.1} parent=11 // pred_check
          %p212 = pneg %p116
        $region18: #{tpu_custom_call.1} parent=11 // pred_check_branch
          %214 = sbr.rel (%p212) target = $region20
        $region19: #{tpu_custom_call.1} parent=11 // pred_region
          _
        $region20: #{tpu_custom_call.1} parent=11 // pred_fallthru
          _
        // Predicated region
        $region21: #{tpu_custom_call.1} parent=11 // pred_check
          %p215 = pneg %p137
        $region22: #{tpu_custom_call.1} parent=11 // pred_check_branch
          %217 = sbr.rel (%p215) target = $region24
        $region23: #{tpu_custom_call.1} parent=11 // pred_region
          %s219 = ssub.s32 1024, 1024
          %220 = vsyncadd [#allocation9], %s219
          %s221 = sshll.u32 [#allocation8], 4
          %s222 = int_to_ptr.vmem [resolvable:$true] %s221
          %227 = dma.hbm_to_vmem [thread:$0]  %s4, 1024, %s222, [#allocation9], 64, 64, 4
        $region24: #{tpu_custom_call.1} parent=11 // pred_fallthru
          _
        // Predicated region
        $region25: #{tpu_custom_call.1} parent=11 // pred_check
          %p228 = pneg %p158
        $region26: #{tpu_custom_call.1} parent=11 // pred_check_branch
          %230 = sbr.rel (%p228) target = $region28
        $region27: #{tpu_custom_call.1} parent=11 // pred_region
          _
        $region28: #{tpu_custom_call.1} parent=11 // pred_fallthru
          _
      $region12: #{tpu_custom_call.1} parent=5 // pred_fallthru
        _
      %p231 = scmp.lt.s32.totalorder %s22, 4
      // Predicated region
      $region29: #{tpu_custom_call.1} parent=5 // pred_check
        %p232 = pneg %p231
      $region30: #{tpu_custom_call.1} parent=5 // pred_check_branch
        %234 = sbr.rel (%p232) target = $region32
      $region31: #{tpu_custom_call.1} parent=5 // pred_region
        // Predicated region
        $region33: #{tpu_custom_call.1} parent=31 // pred_check
          %p235 = pneg %p42
        $region34: #{tpu_custom_call.1} parent=31 // pred_check_branch
          %237 = sbr.rel (%p235) target = $region36
        $region35: #{tpu_custom_call.1} parent=31 // pred_region
          %s238 = sand.u32 %s32, 1
          %s239 = scalar_lea.sflag [#allocation3], %s238
          %s240 = sand.u32 %s32, 1
          %s241 = smul.addr %s240, 64
          %s242 = scalar_lea.vmem [#allocation2], %s241
          %s244 = ssub.s32 1024, 1024
          %245 = vsyncadd %s239, %s244
          %s246 = smul.addr %s22, 16
          %s247 = smul.addr %s246, 64
          %s248 = scalar_lea.hbm %s0, %s247
          %s249 = sshll.u32 %s242, 4
          %s250 = int_to_ptr.vmem [resolvable:$true] %s249
          %255 = dma.hbm_to_vmem [thread:$0]  %s248, 1024, %s250, %s239, 64, 64, 4
        $region36: #{tpu_custom_call.1} parent=31 // pred_fallthru
          _
        // Predicated region
        $region37: #{tpu_custom_call.1} parent=31 // pred_check
          %p256 = pneg %p68
        $region38: #{tpu_custom_call.1} parent=31 // pred_check_branch
          %258 = sbr.rel (%p256) target = $region40
        $region39: #{tpu_custom_call.1} parent=31 // pred_region
          %s259 = sand.u32 %s22, 1
          %s260 = scalar_lea.sflag [#allocation6], %s259
          %s261 = sand.u32 %s58, 1
          %s262 = smul.addr %s261, 64
          %s263 = scalar_lea.vmem [#allocation5], %s262
          %s265 = ssub.s32 1024, 1024
          %266 = vsyncadd %s260, %s265
          %s267 = smul.addr %s22, 16
          %s268 = smul.addr %s267, 64
          %s269 = scalar_lea.hbm %s1, %s268
          %s270 = sshll.u32 %s263, 4
          %s271 = int_to_ptr.vmem [resolvable:$true] %s270
          %276 = dma.hbm_to_vmem [thread:$0]  %s269, 1024, %s271, %s260, 64, 64, 4
        $region40: #{tpu_custom_call.1} parent=31 // pred_fallthru
          _
      $region32: #{tpu_custom_call.1} parent=5 // pred_fallthru
        _
      %p277 = scmp.le.s32.totalorder 1, %s22
      %p278 = scmp.lt.s32.totalorder %s22, 5
      %p279 = pnand %p277, %p278
      %p280 = pneg %p279
      // Predicated region
      $region41: #{tpu_custom_call.1} parent=5 // pred_check
        _
      $region42: #{tpu_custom_call.1} parent=5 // pred_check_branch
        %282 = sbr.rel (%p279) target = $region44
      $region43: #{tpu_custom_call.1} parent=5 // pred_region
        %s283 = ssub.s32 %s22, 1
        %s284 = sand.u32 %s35, 1
        %s285 = scalar_lea.sflag [#allocation3], %s284
        %s286 = sand.u32 %s35, 1
        %s287 = smul.addr %s286, 64
        %s288 = scalar_lea.vmem [#allocation2], %s287
        // Predicated region
        $region45: #{tpu_custom_call.1} parent=43 // pred_check
          %p289 = pneg %p48
        $region46: #{tpu_custom_call.1} parent=43 // pred_check_branch
          %291 = sbr.rel (%p289) target = $region48
        $region47: #{tpu_custom_call.1} parent=43 // pred_region
          %292 = dma.done %s285, 1024
        $region48: #{tpu_custom_call.1} parent=43 // pred_fallthru
          _
        %s293 = sand.u32 %s27, 1
        %s294 = scalar_lea.sflag [#allocation6], %s293
        %s295 = sand.u32 %s61, 1
        %s296 = smul.addr %s295, 64
        %s297 = scalar_lea.vmem [#allocation5], %s296
        // Predicated region
        $region49: #{tpu_custom_call.1} parent=43 // pred_check
          %p298 = pneg %p74
        $region50: #{tpu_custom_call.1} parent=43 // pred_check_branch
          %300 = sbr.rel (%p298) target = $region52
        $region51: #{tpu_custom_call.1} parent=43 // pred_region
          %301 = dma.done %s294, 1024
        $region52: #{tpu_custom_call.1} parent=43 // pred_fallthru
          _
        // Predicated region
        $region53: #{tpu_custom_call.1} parent=43 // pred_check
          %p302 = pneg %p95
        $region54: #{tpu_custom_call.1} parent=43 // pred_check_branch
          %304 = sbr.rel (%p302) target = $region56
        $region55: #{tpu_custom_call.1} parent=43 // pred_region
          %305 = dma.done [#allocation6], 1024
        $region56: #{tpu_custom_call.1} parent=43 // pred_fallthru
          _
        // Predicated region
        $region57: #{tpu_custom_call.1} parent=43 // pred_check
          %p306 = pneg %p137
        $region58: #{tpu_custom_call.1} parent=43 // pred_check_branch
          %308 = sbr.rel (%p306) target = $region60
        $region59: #{tpu_custom_call.1} parent=43 // pred_region
          %309 = dma.done [#allocation9], 1024
        $region60: #{tpu_custom_call.1} parent=43 // pred_fallthru
          _
        %s310 = sand.u32 %s35, 1
        %s311 = scalar_lea.sflag [#allocation3], %s310
        %s312 = sand.u32 %s35, 1
        %s313 = smul.addr %s312, 64
        %s314 = scalar_lea.vmem [#allocation2], %s313
        %p315 = pneg %p48
        %p316 = pneg %p45
        %s317 = sand.u32 %s27, 1
        %s318 = scalar_lea.sflag [#allocation6], %s317
        %s319 = sand.u32 %s61, 1
        %s320 = smul.addr %s319, 64
        %s321 = scalar_lea.vmem [#allocation5], %s320
        %p322 = pneg %p74
        %p323 = pneg %p71
        %p324 = pneg %p95
        %p325 = pneg %p92
        %p326 = pneg %p116
        %p327 = pneg %p113
        %p328 = pneg %p137
        %p329 = pneg %p134
        %p330 = pneg %p158
        %p331 = pneg %p155
        %p332 = pneg %p184
        %p333 = pneg %p181
        %s334 = sand.u32 %s171, 1
        %s335 = scalar_lea.sflag [#allocation4], %s334
        %s336 = sand.u32 %s171, 1
        %s337 = smul.addr %s336, 128
        %s338 = scalar_lea.vmem [#allocation10], %s337
        %v340 = vld [vmem:[%s288] sm:$0xf]
        %v341 = vld [vmem:[%s288 + $0x4] sm:$0xf]
        %v342 = vld [vmem:[%s288 + $0x8] sm:$0xf]
        %v343 = vld [vmem:[%s288 + $0xc] sm:$0xf]
        %v344 = vld [vmem:[%s288 + $0x10] sm:$0xf]
        %v345 = vld [vmem:[%s288 + $0x14] sm:$0xf]
        %v346 = vld [vmem:[%s288 + $0x18] sm:$0xf]
        %v347 = vld [vmem:[%s288 + $0x1c] sm:$0xf]
        %v348 = vld [vmem:[%s288 + $0x20] sm:$0xf]
        %v349 = vld [vmem:[%s288 + $0x24] sm:$0xf]
        %v350 = vld [vmem:[%s288 + $0x28] sm:$0xf]
        %v351 = vld [vmem:[%s288 + $0x2c] sm:$0xf]
        %v352 = vld [vmem:[%s288 + $0x30] sm:$0xf]
        %v353 = vld [vmem:[%s288 + $0x34] sm:$0xf]
        %v354 = vld [vmem:[%s288 + $0x38] sm:$0xf]
        %v355 = vld [vmem:[%s288 + $0x3c] sm:$0xf]
        %v356 = vld [vmem:[%s297] sm:$0xf]
        %v357 = vld [vmem:[%s297 + $0x4] sm:$0xf]
        %v358 = vld [vmem:[%s297 + $0x8] sm:$0xf]
        %v359 = vld [vmem:[%s297 + $0xc] sm:$0xf]
        %v360 = vld [vmem:[%s297 + $0x10] sm:$0xf]
        %v361 = vld [vmem:[%s297 + $0x14] sm:$0xf]
        %v362 = vld [vmem:[%s297 + $0x18] sm:$0xf]
        %v363 = vld [vmem:[%s297 + $0x1c] sm:$0xf]
        %v364 = vld [vmem:[%s297 + $0x20] sm:$0xf]
        %v365 = vld [vmem:[%s297 + $0x24] sm:$0xf]
        %v366 = vld [vmem:[%s297 + $0x28] sm:$0xf]
        %v367 = vld [vmem:[%s297 + $0x2c] sm:$0xf]
        %v368 = vld [vmem:[%s297 + $0x30] sm:$0xf]
        %v369 = vld [vmem:[%s297 + $0x34] sm:$0xf]
        %v370 = vld [vmem:[%s297 + $0x38] sm:$0xf]
        %v371 = vld [vmem:[%s297 + $0x3c] sm:$0xf]
        %v372 = vld [vmem:[#allocation7] sm:$0xf]
        %v373 = vld [vmem:[#allocation7 + $0x4] sm:$0xf]
        %v374 = vld [vmem:[#allocation7 + $0x8] sm:$0xf]
        %v375 = vld [vmem:[#allocation7 + $0xc] sm:$0xf]
        %v376 = vld [vmem:[#allocation7 + $0x10] sm:$0xf]
        %v377 = vld [vmem:[#allocation7 + $0x14] sm:$0xf]
        %v378 = vld [vmem:[#allocation7 + $0x18] sm:$0xf]
        %v379 = vld [vmem:[#allocation7 + $0x1c] sm:$0xf]
        %v380 = vld [vmem:[#allocation7 + $0x20] sm:$0xf]
        %v381 = vld [vmem:[#allocation7 + $0x24] sm:$0xf]
        %v382 = vld [vmem:[#allocation7 + $0x28] sm:$0xf]
        %v383 = vld [vmem:[#allocation7 + $0x2c] sm:$0xf]
        %v384 = vld [vmem:[#allocation7 + $0x30] sm:$0xf]
        %v385 = vld [vmem:[#allocation7 + $0x34] sm:$0xf]
        %v386 = vld [vmem:[#allocation7 + $0x38] sm:$0xf]
        %v387 = vld [vmem:[#allocation7 + $0x3c] sm:$0xf]
        %v404 = vunpack.c.l.b16 %v356
        %v405 = vunpack.c.l.b16 %v357
        %v406 = vunpack.c.l.b16 %v358
        %v407 = vunpack.c.l.b16 %v359
        %v408 = vunpack.c.l.b16 %v360
        %v409 = vunpack.c.l.b16 %v361
        %v410 = vunpack.c.l.b16 %v362
        %v411 = vunpack.c.l.b16 %v363
        %v412 = vunpack.c.l.b16 %v364
        %v413 = vunpack.c.l.b16 %v365
        %v414 = vunpack.c.l.b16 %v366
        %v415 = vunpack.c.l.b16 %v367
        %v416 = vunpack.c.l.b16 %v368
        %v417 = vunpack.c.l.b16 %v369
        %v418 = vunpack.c.l.b16 %v370
        %v419 = vunpack.c.l.b16 %v371
        %v420 = vpack.c.b16 %v405, %v404
        %v421 = vpack.c.b16 %v407, %v406
        %v422 = vpack.c.b16 %v409, %v408
        %v423 = vpack.c.b16 %v411, %v410
        %v424 = vpack.c.b16 %v413, %v412
        %v425 = vpack.c.b16 %v415, %v414
        %v426 = vpack.c.b16 %v417, %v416
        %v427 = vpack.c.b16 %v419, %v418
        %v452 = vunpack.c.l.b16 %v372
        %v453 = vunpack.c.l.b16 %v373
        %v454 = vunpack.c.l.b16 %v374
        %v455 = vunpack.c.l.b16 %v375
        %v456 = vunpack.c.l.b16 %v376
        %v457 = vunpack.c.l.b16 %v377
        %v458 = vunpack.c.l.b16 %v378
        %v459 = vunpack.c.l.b16 %v379
        %v460 = vunpack.c.l.b16 %v380
        %v461 = vunpack.c.l.b16 %v381
        %v462 = vunpack.c.l.b16 %v382
        %v463 = vunpack.c.l.b16 %v383
        %v464 = vunpack.c.l.b16 %v384
        %v465 = vunpack.c.l.b16 %v385
        %v466 = vunpack.c.l.b16 %v386
        %v467 = vunpack.c.l.b16 %v387
        %v468 = vpack.c.b16 %v453, %v452
        %v469 = vpack.c.b16 %v455, %v454
        %v470 = vpack.c.b16 %v457, %v456
        %v471 = vpack.c.b16 %v459, %v458
        %v472 = vpack.c.b16 %v461, %v460
        %v473 = vpack.c.b16 %v463, %v462
        %v474 = vpack.c.b16 %v465, %v464
        %v475 = vpack.c.b16 %v467, %v466
        %484 = vmatprep.subr.bf16.mxu0 0
        %485 = vmatpush1.bf16.msra.mxu0 %v475
        %486 = vmatprep.subr.bf16.mxu0 0
        %487 = vmatpush1.bf16.msra.mxu0 %v474
        %488 = vmatprep.subr.bf16.mxu0 0
        %489 = vmatpush1.bf16.msra.mxu0 %v473
        %490 = vmatprep.subr.bf16.mxu0 0
        %491 = vmatpush1.bf16.msra.mxu0 %v472
        %492 = vmatprep.subr.bf16.mxu0 0
        %493 = vmatpush1.bf16.msra.mxu0 %v471
        %494 = vmatprep.subr.bf16.mxu0 0
        %495 = vmatpush1.bf16.msra.mxu0 %v470
        %496 = vmatprep.subr.bf16.mxu0 0
        %497 = vmatpush1.bf16.msra.mxu0 %v469
        %498 = vmatprep.subr.bf16.mxu0 0
        %499 = vmatpush1.bf16.msra.mxu0 %v468
        %500 = vmatprep.subr.bf16.mxu0 0
        %501 = vmatpush2.bf16.msra.mxu0 0
        %502 = vmatprep.subr.bf16.mxu0 0
        %503 = vmatpush2.bf16.msra.mxu0 0
        %504 = vmatprep.subr.bf16.mxu0 0
        %505 = vmatpush2.bf16.msra.mxu0 0
        %506 = vmatprep.subr.bf16.mxu0 0
        %507 = vmatpush2.bf16.msra.mxu0 0
        %508 = vmatprep.subr.bf16.mxu0 0
        %509 = vmatpush2.bf16.msra.mxu0 0
        %510 = vmatprep.subr.bf16.mxu0 0
        %511 = vmatpush2.bf16.msra.mxu0 0
        %512 = vmatprep.subr.bf16.mxu0 0
        %513 = vmatpush2.bf16.msra.mxu0 0
        %514 = vmatprep.subr.bf16.mxu0 0
        %515 = vmatpush2.bf16.msra.mxu0 0
        %516 = vmatprep.mubr.bf16.mxu0 0
        %517 = vmatmul.mubr.bf16.gmra.mxu0 %v420
        %v518 = vpop.f32.mrf.mxu0
        %v519 = vadd.f32 0.0, %v518
        %v520 = vpop.f32.mrf.mxu0
        %v521 = vpop.f32.mrf.mxu0
        %v522 = vadd.f32 0.0, %v521
        %v523 = vpop.f32.mrf.mxu0
        %524 = vmatprep.mubr.bf16.mxu0 0
        %525 = vmatmul.mubr.bf16.gmra.mxu0 %v421
        %v526 = vpop.f32.mrf.mxu0
        %v527 = vadd.f32 0.0, %v526
        %v528 = vpop.f32.mrf.mxu0
        %v529 = vpop.f32.mrf.mxu0
        %v530 = vadd.f32 0.0, %v529
        %v531 = vpop.f32.mrf.mxu0
        %532 = vmatprep.mubr.bf16.mxu0 0
        %533 = vmatmul.mubr.bf16.gmra.mxu0 %v422
        %v534 = vpop.f32.mrf.mxu0
        %v535 = vadd.f32 0.0, %v534
        %v536 = vpop.f32.mrf.mxu0
        %v537 = vpop.f32.mrf.mxu0
        %v538 = vadd.f32 0.0, %v537
        %v539 = vpop.f32.mrf.mxu0
        %540 = vmatprep.mubr.bf16.mxu0 0
        %541 = vmatmul.mubr.bf16.gmra.mxu0 %v423
        %v542 = vpop.f32.mrf.mxu0
        %v543 = vadd.f32 0.0, %v542
        %v544 = vpop.f32.mrf.mxu0
        %v545 = vpop.f32.mrf.mxu0
        %v546 = vadd.f32 0.0, %v545
        %v547 = vpop.f32.mrf.mxu0
        %548 = vmatprep.mubr.bf16.mxu0 0
        %549 = vmatmul.mubr.bf16.gmra.mxu0 %v424
        %v550 = vpop.f32.mrf.mxu0
        %v551 = vadd.f32 0.0, %v550
        %v552 = vpop.f32.mrf.mxu0
        %v553 = vpop.f32.mrf.mxu0
        %v554 = vadd.f32 0.0, %v553
        %v555 = vpop.f32.mrf.mxu0
        %556 = vmatprep.mubr.bf16.mxu0 0
        %557 = vmatmul.mubr.bf16.gmra.mxu0 %v425
        %v558 = vpop.f32.mrf.mxu0
        %v559 = vadd.f32 0.0, %v558
        %v560 = vpop.f32.mrf.mxu0
        %v561 = vpop.f32.mrf.mxu0
        %v562 = vadd.f32 0.0, %v561
        %v563 = vpop.f32.mrf.mxu0
        %564 = vmatprep.mubr.bf16.mxu0 0
        %565 = vmatmul.mubr.bf16.gmra.mxu0 %v426
        %v566 = vpop.f32.mrf.mxu0
        %v567 = vadd.f32 0.0, %v566
        %v568 = vpop.f32.mrf.mxu0
        %v569 = vpop.f32.mrf.mxu0
        %v570 = vadd.f32 0.0, %v569
        %v571 = vpop.f32.mrf.mxu0
        %572 = vmatprep.mubr.bf16.mxu0 0
        %573 = vmatmul.mubr.bf16.gmra.mxu0 %v427
        %v574 = vpop.f32.mrf.mxu0
        %v575 = vadd.f32 0.0, %v574
        %v576 = vpop.f32.mrf.mxu0
        %v577 = vpop.f32.mrf.mxu0
        %v578 = vadd.f32 0.0, %v577
        %v579 = vpop.f32.mrf.mxu0
        %580 = vdwg.mxu0
        %v581 = vpack.c.bf16 %v522, %v519
        %v582 = vpack.c.bf16 %v530, %v527
        %v583 = vpack.c.bf16 %v538, %v535
        %v584 = vpack.c.bf16 %v546, %v543
        %v585 = vpack.c.bf16 %v554, %v551
        %v586 = vpack.c.bf16 %v562, %v559
        %v587 = vpack.c.bf16 %v570, %v567
        %v588 = vpack.c.bf16 %v578, %v575
        %v589 = vld [vmem:[%s3] sm:$0x1]
        %v591 = vlaneseq
        %v592 = vshrl.u32 %v591, 7
        %v593 = vsub.s32 0, %v592
        %v594 = vrot.slane %v589, %v593
        %v612 = vunpack.c.l.b16 %v340
        %v613 = vunpack.c.l.b16 %v341
        %v614 = vunpack.c.l.b16 %v342
        %v615 = vunpack.c.l.b16 %v343
        %v616 = vunpack.c.l.b16 %v344
        %v617 = vunpack.c.l.b16 %v345
        %v618 = vunpack.c.l.b16 %v346
        %v619 = vunpack.c.l.b16 %v347
        %v620 = vunpack.c.l.b16 %v348
        %v621 = vunpack.c.l.b16 %v349
        %v622 = vunpack.c.l.b16 %v350
        %v623 = vunpack.c.l.b16 %v351
        %v624 = vunpack.c.l.b16 %v352
        %v625 = vunpack.c.l.b16 %v353
        %v626 = vunpack.c.l.b16 %v354
        %v627 = vunpack.c.l.b16 %v355
        %v628 = vpack.c.b16 %v613, %v612
        %v629 = vpack.c.b16 %v615, %v614
        %v630 = vpack.c.b16 %v617, %v616
        %v631 = vpack.c.b16 %v619, %v618
        %v632 = vpack.c.b16 %v621, %v620
        %v633 = vpack.c.b16 %v623, %v622
        %v634 = vpack.c.b16 %v625, %v624
        %v635 = vpack.c.b16 %v627, %v626
        %644 = vmatprep.subr.bf16.mxu0 0
        %645 = vmatpush1.bf16.msra.mxu0 %v588
        %646 = vmatprep.subr.bf16.mxu0 0
        %647 = vmatpush1.bf16.msra.mxu0 %v587
        %648 = vmatprep.subr.bf16.mxu0 0
        %649 = vmatpush1.bf16.msra.mxu0 %v586
        %650 = vmatprep.subr.bf16.mxu0 0
        %651 = vmatpush1.bf16.msra.mxu0 %v585
        %652 = vmatprep.subr.bf16.mxu0 0
        %653 = vmatpush1.bf16.msra.mxu0 %v584
        %654 = vmatprep.subr.bf16.mxu0 0
        %655 = vmatpush1.bf16.msra.mxu0 %v583
        %656 = vmatprep.subr.bf16.mxu0 0
        %657 = vmatpush1.bf16.msra.mxu0 %v582
        %658 = vmatprep.subr.bf16.mxu0 0
        %659 = vmatpush1.bf16.msra.mxu0 %v581
        %660 = vmatprep.subr.bf16.mxu0 0
        %661 = vmatpush2.bf16.msra.mxu0 0
        %662 = vmatprep.subr.bf16.mxu0 0
        %663 = vmatpush2.bf16.msra.mxu0 0
        %664 = vmatprep.subr.bf16.mxu0 0
        %665 = vmatpush2.bf16.msra.mxu0 0
        %666 = vmatprep.subr.bf16.mxu0 0
        %667 = vmatpush2.bf16.msra.mxu0 0
        %668 = vmatprep.subr.bf16.mxu0 0
        %669 = vmatpush2.bf16.msra.mxu0 0
        %670 = vmatprep.subr.bf16.mxu0 0
        %671 = vmatpush2.bf16.msra.mxu0 0
        %672 = vmatprep.subr.bf16.mxu0 0
        %673 = vmatpush2.bf16.msra.mxu0 0
        %674 = vmatprep.subr.bf16.mxu0 0
        %675 = vmatpush2.bf16.msra.mxu0 0
        %676 = vmatprep.mubr.bf16.mxu0 0
        %677 = vmatmul.mubr.bf16.gmra.mxu0 %v628
        %v678 = vpop.f32.mrf.mxu0
        %v679 = vadd.f32 %v594, %v678
        %v680 = vpop.f32.mrf.mxu0
        %v681 = vpop.f32.mrf.mxu0
        %v682 = vadd.f32 %v594, %v681
        %v683 = vpop.f32.mrf.mxu0
        %684 = vmatprep.mubr.bf16.mxu0 0
        %685 = vmatmul.mubr.bf16.gmra.mxu0 %v629
        %v686 = vpop.f32.mrf.mxu0
        %v687 = vadd.f32 %v594, %v686
        %v688 = vpop.f32.mrf.mxu0
        %v689 = vpop.f32.mrf.mxu0
        %v690 = vadd.f32 %v594, %v689
        %v691 = vpop.f32.mrf.mxu0
        %692 = vmatprep.mubr.bf16.mxu0 0
        %693 = vmatmul.mubr.bf16.gmra.mxu0 %v630
        %v694 = vpop.f32.mrf.mxu0
        %v695 = vadd.f32 %v594, %v694
        %v696 = vpop.f32.mrf.mxu0
        %v697 = vpop.f32.mrf.mxu0
        %v698 = vadd.f32 %v594, %v697
        %v699 = vpop.f32.mrf.mxu0
        %700 = vmatprep.mubr.bf16.mxu0 0
        %701 = vmatmul.mubr.bf16.gmra.mxu0 %v631
        %v702 = vpop.f32.mrf.mxu0
        %v703 = vadd.f32 %v594, %v702
        %v704 = vpop.f32.mrf.mxu0
        %v705 = vpop.f32.mrf.mxu0
        %v706 = vadd.f32 %v594, %v705
        %v707 = vpop.f32.mrf.mxu0
        %708 = vmatprep.mubr.bf16.mxu0 0
        %709 = vmatmul.mubr.bf16.gmra.mxu0 %v632
        %v710 = vpop.f32.mrf.mxu0
        %v711 = vadd.f32 %v594, %v710
        %v712 = vpop.f32.mrf.mxu0
        %v713 = vpop.f32.mrf.mxu0
        %v714 = vadd.f32 %v594, %v713
        %v715 = vpop.f32.mrf.mxu0
        %716 = vmatprep.mubr.bf16.mxu0 0
        %717 = vmatmul.mubr.bf16.gmra.mxu0 %v633
        %v718 = vpop.f32.mrf.mxu0
        %v719 = vadd.f32 %v594, %v718
        %v720 = vpop.f32.mrf.mxu0
        %v721 = vpop.f32.mrf.mxu0
        %v722 = vadd.f32 %v594, %v721
        %v723 = vpop.f32.mrf.mxu0
        %724 = vmatprep.mubr.bf16.mxu0 0
        %725 = vmatmul.mubr.bf16.gmra.mxu0 %v634
        %v726 = vpop.f32.mrf.mxu0
        %v727 = vadd.f32 %v594, %v726
        %v728 = vpop.f32.mrf.mxu0
        %v729 = vpop.f32.mrf.mxu0
        %v730 = vadd.f32 %v594, %v729
        %v731 = vpop.f32.mrf.mxu0
        %732 = vmatprep.mubr.bf16.mxu0 0
        %733 = vmatmul.mubr.bf16.gmra.mxu0 %v635
        %v734 = vpop.f32.mrf.mxu0
        %v735 = vadd.f32 %v594, %v734
        %v736 = vpop.f32.mrf.mxu0
        %v737 = vpop.f32.mrf.mxu0
        %v738 = vadd.f32 %v594, %v737
        %v739 = vpop.f32.mrf.mxu0
        %740 = vdwg.mxu0
        %v741 = vmax.f32 %v679, 0.0
        %v742 = vmax.f32 %v682, 0.0
        %v743 = vmax.f32 %v687, 0.0
        %v744 = vmax.f32 %v690, 0.0
        %v745 = vmax.f32 %v695, 0.0
        %v746 = vmax.f32 %v698, 0.0
        %v747 = vmax.f32 %v703, 0.0
        %v748 = vmax.f32 %v706, 0.0
        %v749 = vmax.f32 %v711, 0.0
        %v750 = vmax.f32 %v714, 0.0
        %v751 = vmax.f32 %v719, 0.0
        %v752 = vmax.f32 %v722, 0.0
        %v753 = vmax.f32 %v727, 0.0
        %v754 = vmax.f32 %v730, 0.0
        %v755 = vmax.f32 %v735, 0.0
        %v756 = vmax.f32 %v738, 0.0
        %v757 = vpack.c.bf16 %v742, %v741
        %v758 = vpack.c.bf16 %v744, %v743
        %v759 = vpack.c.bf16 %v746, %v745
        %v760 = vpack.c.bf16 %v748, %v747
        %v761 = vpack.c.bf16 %v750, %v749
        %v762 = vpack.c.bf16 %v752, %v751
        %v763 = vpack.c.bf16 %v754, %v753
        %v764 = vpack.c.bf16 %v756, %v755
        %v765 = vld [vmem:[#allocation8] sm:$0xf]
        %v766 = vld [vmem:[#allocation8 + $0x4] sm:$0xf]
        %v767 = vld [vmem:[#allocation8 + $0x8] sm:$0xf]
        %v768 = vld [vmem:[#allocation8 + $0xc] sm:$0xf]
        %v769 = vld [vmem:[#allocation8 + $0x10] sm:$0xf]
        %v770 = vld [vmem:[#allocation8 + $0x14] sm:$0xf]
        %v771 = vld [vmem:[#allocation8 + $0x18] sm:$0xf]
        %v772 = vld [vmem:[#allocation8 + $0x1c] sm:$0xf]
        %v773 = vld [vmem:[#allocation8 + $0x20] sm:$0xf]
        %v774 = vld [vmem:[#allocation8 + $0x24] sm:$0xf]
        %v775 = vld [vmem:[#allocation8 + $0x28] sm:$0xf]
        %v776 = vld [vmem:[#allocation8 + $0x2c] sm:$0xf]
        %v777 = vld [vmem:[#allocation8 + $0x30] sm:$0xf]
        %v778 = vld [vmem:[#allocation8 + $0x34] sm:$0xf]
        %v779 = vld [vmem:[#allocation8 + $0x38] sm:$0xf]
        %v780 = vld [vmem:[#allocation8 + $0x3c] sm:$0xf]
        %v797 = vunpack.c.l.b16 %v765
        %v798 = vunpack.c.l.b16 %v766
        %v799 = vunpack.c.l.b16 %v767
        %v800 = vunpack.c.l.b16 %v768
        %v801 = vunpack.c.l.b16 %v769
        %v802 = vunpack.c.l.b16 %v770
        %v803 = vunpack.c.l.b16 %v771
        %v804 = vunpack.c.l.b16 %v772
        %v805 = vunpack.c.l.b16 %v773
        %v806 = vunpack.c.l.b16 %v774
        %v807 = vunpack.c.l.b16 %v775
        %v808 = vunpack.c.l.b16 %v776
        %v809 = vunpack.c.l.b16 %v777
        %v810 = vunpack.c.l.b16 %v778
        %v811 = vunpack.c.l.b16 %v779
        %v812 = vunpack.c.l.b16 %v780
        %v813 = vpack.c.b16 %v798, %v797
        %v814 = vpack.c.b16 %v800, %v799
        %v815 = vpack.c.b16 %v802, %v801
        %v816 = vpack.c.b16 %v804, %v803
        %v817 = vpack.c.b16 %v806, %v805
        %v818 = vpack.c.b16 %v808, %v807
        %v819 = vpack.c.b16 %v810, %v809
        %v820 = vpack.c.b16 %v812, %v811
        %829 = vmatprep.subr.bf16.mxu0 0
        %830 = vmatpush1.bf16.msra.mxu0 %v820
        %831 = vmatprep.subr.bf16.mxu0 0
        %832 = vmatpush1.bf16.msra.mxu0 %v819
        %833 = vmatprep.subr.bf16.mxu0 0
        %834 = vmatpush1.bf16.msra.mxu0 %v818
        %835 = vmatprep.subr.bf16.mxu0 0
        %836 = vmatpush1.bf16.msra.mxu0 %v817
        %837 = vmatprep.subr.bf16.mxu0 0
        %838 = vmatpush1.bf16.msra.mxu0 %v816
        %839 = vmatprep.subr.bf16.mxu0 0
        %840 = vmatpush1.bf16.msra.mxu0 %v815
        %841 = vmatprep.subr.bf16.mxu0 0
        %842 = vmatpush1.bf16.msra.mxu0 %v814
        %843 = vmatprep.subr.bf16.mxu0 0
        %844 = vmatpush1.bf16.msra.mxu0 %v813
        %845 = vmatprep.subr.bf16.mxu0 0
        %846 = vmatpush2.bf16.msra.mxu0 0
        %847 = vmatprep.subr.bf16.mxu0 0
        %848 = vmatpush2.bf16.msra.mxu0 0
        %849 = vmatprep.subr.bf16.mxu0 0
        %850 = vmatpush2.bf16.msra.mxu0 0
        %851 = vmatprep.subr.bf16.mxu0 0
        %852 = vmatpush2.bf16.msra.mxu0 0
        %853 = vmatprep.subr.bf16.mxu0 0
        %854 = vmatpush2.bf16.msra.mxu0 0
        %855 = vmatprep.subr.bf16.mxu0 0
        %856 = vmatpush2.bf16.msra.mxu0 0
        %857 = vmatprep.subr.bf16.mxu0 0
        %858 = vmatpush2.bf16.msra.mxu0 0
        %859 = vmatprep.subr.bf16.mxu0 0
        %860 = vmatpush2.bf16.msra.mxu0 0
        %861 = vmatprep.mubr.bf16.mxu0 0
        %862 = vmatmul.mubr.bf16.gmra.mxu0 %v757
        %v863 = vpop.f32.mrf.mxu0
        %v864 = vadd.f32 0.0, %v863
        %v865 = vpop.f32.mrf.mxu0
        %v866 = vpop.f32.mrf.mxu0
        %v867 = vadd.f32 0.0, %v866
        %v868 = vpop.f32.mrf.mxu0
        %869 = vmatprep.mubr.bf16.mxu0 0
        %870 = vmatmul.mubr.bf16.gmra.mxu0 %v758
        %v871 = vpop.f32.mrf.mxu0
        %v872 = vadd.f32 0.0, %v871
        %v873 = vpop.f32.mrf.mxu0
        %v874 = vpop.f32.mrf.mxu0
        %v875 = vadd.f32 0.0, %v874
        %v876 = vpop.f32.mrf.mxu0
        %877 = vmatprep.mubr.bf16.mxu0 0
        %878 = vmatmul.mubr.bf16.gmra.mxu0 %v759
        %v879 = vpop.f32.mrf.mxu0
        %v880 = vadd.f32 0.0, %v879
        %v881 = vpop.f32.mrf.mxu0
        %v882 = vpop.f32.mrf.mxu0
        %v883 = vadd.f32 0.0, %v882
        %v884 = vpop.f32.mrf.mxu0
        %885 = vmatprep.mubr.bf16.mxu0 0
        %886 = vmatmul.mubr.bf16.gmra.mxu0 %v760
        %v887 = vpop.f32.mrf.mxu0
        %v888 = vadd.f32 0.0, %v887
        %v889 = vpop.f32.mrf.mxu0
        %v890 = vpop.f32.mrf.mxu0
        %v891 = vadd.f32 0.0, %v890
        %v892 = vpop.f32.mrf.mxu0
        %893 = vmatprep.mubr.bf16.mxu0 0
        %894 = vmatmul.mubr.bf16.gmra.mxu0 %v761
        %v895 = vpop.f32.mrf.mxu0
        %v896 = vadd.f32 0.0, %v895
        %v897 = vpop.f32.mrf.mxu0
        %v898 = vpop.f32.mrf.mxu0
        %v899 = vadd.f32 0.0, %v898
        %v900 = vpop.f32.mrf.mxu0
        %901 = vmatprep.mubr.bf16.mxu0 0
        %902 = vmatmul.mubr.bf16.gmra.mxu0 %v762
        %v903 = vpop.f32.mrf.mxu0
        %v904 = vadd.f32 0.0, %v903
        %v905 = vpop.f32.mrf.mxu0
        %v906 = vpop.f32.mrf.mxu0
        %v907 = vadd.f32 0.0, %v906
        %v908 = vpop.f32.mrf.mxu0
        %909 = vmatprep.mubr.bf16.mxu0 0
        %910 = vmatmul.mubr.bf16.gmra.mxu0 %v763
        %v911 = vpop.f32.mrf.mxu0
        %v912 = vadd.f32 0.0, %v911
        %v913 = vpop.f32.mrf.mxu0
        %v914 = vpop.f32.mrf.mxu0
        %v915 = vadd.f32 0.0, %v914
        %v916 = vpop.f32.mrf.mxu0
        %917 = vmatprep.mubr.bf16.mxu0 0
        %918 = vmatmul.mubr.bf16.gmra.mxu0 %v764
        %v919 = vpop.f32.mrf.mxu0
        %v920 = vadd.f32 0.0, %v919
        %v921 = vpop.f32.mrf.mxu0
        %v922 = vpop.f32.mrf.mxu0
        %v923 = vadd.f32 0.0, %v922
        %v924 = vpop.f32.mrf.mxu0
        %925 = vdwg.mxu0
        %v926 = vpack.c.bf16 %v867, %v864
        %v927 = vpack.c.bf16 %v875, %v872
        %v928 = vpack.c.bf16 %v883, %v880
        %v929 = vpack.c.bf16 %v891, %v888
        %v930 = vpack.c.bf16 %v899, %v896
        %v931 = vpack.c.bf16 %v907, %v904
        %v932 = vpack.c.bf16 %v915, %v912
        %v933 = vpack.c.bf16 %v923, %v920
        %v934 = vld [vmem:[%s5] sm:$0x1]
        %v936 = vlaneseq
        %v937 = vshrl.u32 %v936, 7
        %v938 = vsub.s32 0, %v937
        %v939 = vrot.slane %v934, %v938
        %941 = vmatprep.subr.bf16.mxu0 0
        %942 = vmatpush1.bf16.msra.mxu0 %v933
        %943 = vmatprep.subr.bf16.mxu0 0
        %944 = vmatpush1.bf16.msra.mxu0 %v932
        %945 = vmatprep.subr.bf16.mxu0 0
        %946 = vmatpush1.bf16.msra.mxu0 %v931
        %947 = vmatprep.subr.bf16.mxu0 0
        %948 = vmatpush1.bf16.msra.mxu0 %v930
        %949 = vmatprep.subr.bf16.mxu0 0
        %950 = vmatpush1.bf16.msra.mxu0 %v929
        %951 = vmatprep.subr.bf16.mxu0 0
        %952 = vmatpush1.bf16.msra.mxu0 %v928
        %953 = vmatprep.subr.bf16.mxu0 0
        %954 = vmatpush1.bf16.msra.mxu0 %v927
        %955 = vmatprep.subr.bf16.mxu0 0
        %956 = vmatpush1.bf16.msra.mxu0 %v926
        %957 = vmatprep.subr.bf16.mxu0 0
        %958 = vmatpush2.bf16.msra.mxu0 0
        %959 = vmatprep.subr.bf16.mxu0 0
        %960 = vmatpush2.bf16.msra.mxu0 0
        %961 = vmatprep.subr.bf16.mxu0 0
        %962 = vmatpush2.bf16.msra.mxu0 0
        %963 = vmatprep.subr.bf16.mxu0 0
        %964 = vmatpush2.bf16.msra.mxu0 0
        %965 = vmatprep.subr.bf16.mxu0 0
        %966 = vmatpush2.bf16.msra.mxu0 0
        %967 = vmatprep.subr.bf16.mxu0 0
        %968 = vmatpush2.bf16.msra.mxu0 0
        %969 = vmatprep.subr.bf16.mxu0 0
        %970 = vmatpush2.bf16.msra.mxu0 0
        %971 = vmatprep.subr.bf16.mxu0 0
        %972 = vmatpush2.bf16.msra.mxu0 0
        %973 = vmatprep.mubr.bf16.mxu0 0
        %974 = vmatmul.mubr.bf16.gmra.mxu0 %v628
        %v975 = vpop.f32.mrf.mxu0
        %v976 = vadd.f32 %v939, %v975
        %v977 = vpop.f32.mrf.mxu0
        %v978 = vpop.f32.mrf.mxu0
        %v979 = vadd.f32 %v939, %v978
        %v980 = vpop.f32.mrf.mxu0
        %981 = vmatprep.mubr.bf16.mxu0 0
        %982 = vmatmul.mubr.bf16.gmra.mxu0 %v629
        %v983 = vpop.f32.mrf.mxu0
        %v984 = vadd.f32 %v939, %v983
        %v985 = vpop.f32.mrf.mxu0
        %v986 = vpop.f32.mrf.mxu0
        %v987 = vadd.f32 %v939, %v986
        %v988 = vpop.f32.mrf.mxu0
        %989 = vmatprep.mubr.bf16.mxu0 0
        %990 = vmatmul.mubr.bf16.gmra.mxu0 %v630
        %v991 = vpop.f32.mrf.mxu0
        %v992 = vadd.f32 %v939, %v991
        %v993 = vpop.f32.mrf.mxu0
        %v994 = vpop.f32.mrf.mxu0
        %v995 = vadd.f32 %v939, %v994
        %v996 = vpop.f32.mrf.mxu0
        %997 = vmatprep.mubr.bf16.mxu0 0
        %998 = vmatmul.mubr.bf16.gmra.mxu0 %v631
        %v999 = vpop.f32.mrf.mxu0
        %v1000 = vadd.f32 %v939, %v999
        %v1001 = vpop.f32.mrf.mxu0
        %v1002 = vpop.f32.mrf.mxu0
        %v1003 = vadd.f32 %v939, %v1002
        %v1004 = vpop.f32.mrf.mxu0
        %1005 = vmatprep.mubr.bf16.mxu0 0
        %1006 = vmatmul.mubr.bf16.gmra.mxu0 %v632
        %v1007 = vpop.f32.mrf.mxu0
        %v1008 = vadd.f32 %v939, %v1007
        %v1009 = vpop.f32.mrf.mxu0
        %v1010 = vpop.f32.mrf.mxu0
        %v1011 = vadd.f32 %v939, %v1010
        %v1012 = vpop.f32.mrf.mxu0
        %1013 = vmatprep.mubr.bf16.mxu0 0
        %1014 = vmatmul.mubr.bf16.gmra.mxu0 %v633
        %v1015 = vpop.f32.mrf.mxu0
        %v1016 = vadd.f32 %v939, %v1015
        %v1017 = vpop.f32.mrf.mxu0
        %v1018 = vpop.f32.mrf.mxu0
        %v1019 = vadd.f32 %v939, %v1018
        %v1020 = vpop.f32.mrf.mxu0
        %1021 = vmatprep.mubr.bf16.mxu0 0
        %1022 = vmatmul.mubr.bf16.gmra.mxu0 %v634
        %v1023 = vpop.f32.mrf.mxu0
        %v1024 = vadd.f32 %v939, %v1023
        %v1025 = vpop.f32.mrf.mxu0
        %v1026 = vpop.f32.mrf.mxu0
        %v1027 = vadd.f32 %v939, %v1026
        %v1028 = vpop.f32.mrf.mxu0
        %1029 = vmatprep.mubr.bf16.mxu0 0
        %1030 = vmatmul.mubr.bf16.gmra.mxu0 %v635
        %v1031 = vpop.f32.mrf.mxu0
        %v1032 = vadd.f32 %v939, %v1031
        %v1033 = vpop.f32.mrf.mxu0
        %v1034 = vpop.f32.mrf.mxu0
        %v1035 = vadd.f32 %v939, %v1034
        %v1036 = vpop.f32.mrf.mxu0
        %1037 = vdwg.mxu0
        %1038 = vst [vmem:[%s338] sm:$0xff] %v976
        %1039 = vst [vmem:[%s338 + $0x8] sm:$0xff] %v979
        %1040 = vst [vmem:[%s338 + $0x10] sm:$0xff] %v984
        %1041 = vst [vmem:[%s338 + $0x18] sm:$0xff] %v987
        %1042 = vst [vmem:[%s338 + $0x20] sm:$0xff] %v992
        %1043 = vst [vmem:[%s338 + $0x28] sm:$0xff] %v995
        %1044 = vst [vmem:[%s338 + $0x30] sm:$0xff] %v1000
        %1045 = vst [vmem:[%s338 + $0x38] sm:$0xff] %v1003
        %1046 = vst [vmem:[%s338 + $0x40] sm:$0xff] %v1008
        %1047 = vst [vmem:[%s338 + $0x48] sm:$0xff] %v1011
        %1048 = vst [vmem:[%s338 + $0x50] sm:$0xff] %v1016
        %1049 = vst [vmem:[%s338 + $0x58] sm:$0xff] %v1019
        %1050 = vst [vmem:[%s338 + $0x60] sm:$0xff] %v1024
        %1051 = vst [vmem:[%s338 + $0x68] sm:$0xff] %v1027
        %1052 = vst [vmem:[%s338 + $0x70] sm:$0xff] %v1032
        %1053 = vst [vmem:[%s338 + $0x78] sm:$0xff] %v1035
        %s1054 = sand.u32 %s171, 1
        %s1055 = scalar_lea.sflag [#allocation4], %s1054
        %s1056 = sand.u32 %s171, 1
        %s1057 = smul.addr %s1056, 128
        %s1058 = scalar_lea.vmem [#allocation10], %s1057
        // Predicated region
        $region61: #{tpu_custom_call.1} parent=43 // pred_check
          %p1059 = pneg %p181
        $region62: #{tpu_custom_call.1} parent=43 // pred_check_branch
          %1061 = sbr.rel (%p1059) target = $region64
        $region63: #{tpu_custom_call.1} parent=43 // pred_region
          %s1063 = ssub.s32 2048, 2048
          %1064 = vsyncadd %s1055, %s1063
          %s1065 = smul.addr %s27, 16
          %s1066 = smul.addr %s1065, 128
          %s1067 = scalar_lea.hbm %s6, %s1066
          %s1068 = sshll.u32 %s1058, 4
          %s1069 = int_to_ptr.vmem [resolvable:$true] %s1068
          %1074 = dma.vmem_to_hbm [thread:$0]  %s1069, 2048, %s1067, %s1055, 128, 128, 8
        $region64: #{tpu_custom_call.1} parent=43 // pred_fallthru
          _
      $region44: #{tpu_custom_call.1} parent=5 // pred_fallthru
        _
      %p1075 = scmp.le.s32.totalorder 2, %s22
      // Predicated region
      $region65: #{tpu_custom_call.1} parent=5 // pred_check
        %p1076 = pneg %p1075
      $region66: #{tpu_custom_call.1} parent=5 // pred_check_branch
        %1078 = sbr.rel (%p1076) target = $region68
      $region67: #{tpu_custom_call.1} parent=5 // pred_region
        %s1079 = ssub.s32 %s22, 2
        // Predicated region
        $region69: #{tpu_custom_call.1} parent=67 // pred_check
          %p1080 = pneg %p187
        $region70: #{tpu_custom_call.1} parent=67 // pred_check_branch
          %1082 = sbr.rel (%p1080) target = $region72
        $region71: #{tpu_custom_call.1} parent=67 // pred_region
          %s1083 = sand.u32 %s172, 1
          %s1084 = scalar_lea.sflag [#allocation4], %s1083
          %s1085 = sand.u32 %s172, 1
          %s1086 = smul.addr %s1085, 128
          %s1087 = scalar_lea.vmem [#allocation10], %s1086
          %1088 = dma.done %s1084, 2048
        $region72: #{tpu_custom_call.1} parent=67 // pred_fallthru
          _
      $region68: #{tpu_custom_call.1} parent=5 // pred_fallthru
        _
    $region6: #{tpu_custom_call.1} parent=1 // loop_footer
      %s26 = sadd.s32 1, %s22
    $region7: #{tpu_custom_call.1} parent=1 // loop_footer_branch
      %21 = sbr.rel target = $region3
    $region8: #{tpu_custom_call.1} parent=1 // loop_exit
      _
    %1089 = vsyncpa [#allocation3], 1
    %s1090 = scalar_lea.sflag [#allocation3], 1
    %1091 = vsyncpa %s1090, 1
    %1092 = vsyncpa [#allocation6], 1
    %s1093 = scalar_lea.sflag [#allocation6], 1
    %1094 = vsyncpa %s1093, 1
    %1095 = vsyncpa [#allocation9], 1
    %1096 = vsyncpa [#allocation4], 1
    %s1097 = scalar_lea.sflag [#allocation4], 1
    %1098 = vsyncpa %s1097, 1

</llo_original>
